<compile_context>
chip_gen: v7x
topology: tpu7x:2x2x1
jax: 0.10.0
libtpu: 0.0.40
codegen_flags: <defaults>
</compile_context>

<pallas_src>
import functools

import jax
import jax.numpy as jnp
from jax import lax
from jax.experimental import pallas as pl
from jax.experimental.pallas import tpu as pltpu

NEG_INF = -1e30


def _round_up(x, m):
    return (x + m - 1) // m * m


def _vmem_capacity_bytes():
    try:
        return int(pltpu.get_tpu_info().vmem_capacity_bytes)
    except Exception:
        return 64 * 1024 * 1024  # conservative default (v7x per-TC VMEM)


def _pick_src_tile(n):
    for tk in (512, 256, 128):
        if n % tk == 0:
            return tk
    return n  # full-dim block is always a legal block shape


def _vmem_need_bytes(tm, tk, h0, pad1, pad_out, heads, h1):
    """Rough per-step VMEM footprint (double-buffered inputs + f32 temps)."""
    adj2 = 2 * tm * tk                                  # int8 adjacency tile x2
    k1 = (adj2
          + 2 * tm * h0 * 2 + 2 * tk * h0 * 2           # h_row / h_src (bf16)
          + 8 * (tm + tk) * 4                           # s / cew / has_edge vecs
          + tm * (h0 + 2) * 4                           # online-softmax scratch
          + 4 * tm * tk * 4                             # f32 logits temporaries
          + 2 * tm * pad1 * 2                           # slab out block (bf16)
          + h0 * pad1 * 2 + pad1 * 4)
    k2 = (adj2
          + 2 * tm * pad1 * 2 + 2 * tk * pad1 * 2       # slab row / src (bf16)
          + heads * tm * (h1 + 2) * 4                   # per-head scratch
          + 4 * tm * tk * 4                             # f32 logits temporaries
          + 2 * tm * pad_out * 4                        # fc out block (f32)
          + h1 * pad_out * 2 + pad_out * 4)
    return max(k1, k2)


def _pick_row_tile(n, tk, h0, pad1, pad_out, heads, h1, budget):
    cands = [t for t in (512, 256, 128, 64, 32, 16, 8) if t <= n and n % t == 0]
    if not cands:
        return n
    # Prefer >= 2 row steps so the "parallel" axis can shard across both
    # TensorCores on v7x; fall back to the largest tile that fits VMEM.
    for prefer_two in (True, False):
        for tm in cands:
            if prefer_two and n // tm < 2:
                continue
            if _vmem_need_bytes(tm, tk, h0, pad1, pad_out, heads, h1) <= budget:
                return tm
    return cands[-1]


# --------------------------------------------------------------------------
# Kernel 0: hoisted lin(x) projection + per-node attention score s=(h*att).sum
# --------------------------------------------------------------------------
def lin_proj_kernel(x_ref, w1_ref, b1_ref, att_ref, h_ref, s_ref):
    h = jnp.dot(x_ref[...], w1_ref[...],
                preferred_element_type=jnp.float32) + b1_ref[...]
    h_ref[...] = h.astype(h_ref.dtype)
    s_ref[...] = jnp.sum(h * att_ref[...], axis=-1, keepdims=True)


# --------------------------------------------------------------------------
# Kernel 1: CEW-GAT layer (online masked softmax over source tiles) + fused
#           [q*scale | k | v | skip | pad] projection into a lane-dense slab.
# --------------------------------------------------------------------------
def cew_gat_kernel(h_row_ref, h_src_ref, s_row_ref, s_src_ref,
                   cew_row_ref, cew_src_ref, adj_ref, has_edge_ref,
                   wcat_ref, bcat_ref, slab_ref, m_sc, l_sc, acc_sc):
    kidx = pl.program_id(1)

    @pl.when(kidx == 0)
    def _():
        m_sc[...] = jnp.full_like(m_sc, NEG_INF)
        l_sc[...] = jnp.zeros_like(l_sc)
        acc_sc[...] = jnp.zeros_like(acc_sc)

    adj = adj_ref[...].astype(jnp.float32) > 0.0          # (TM, TK) edge mask

    # raw[i, j] = leaky_relu(s_i + s_j) * (cew_i + cew_j)
    raw = s_row_ref[...] + s_src_ref[...]
    raw = jnp.where(raw > 0, raw, 0.01 * raw)              # leaky_relu(0.01)
    raw = raw * (cew_row_ref[...] + cew_src_ref[...])

    # Online masked softmax over source tiles.
    m_old = m_sc[...]
    m_new = jnp.maximum(
        m_old, jnp.max(jnp.where(adj, raw, NEG_INF), axis=-1, keepdims=True))
    corr = jnp.exp(m_old - m_new)
    p = jnp.where(adj, jnp.exp(raw - m_new), 0.0)
    l_sc[...] = corr * l_sc[...] + jnp.sum(p, axis=-1, keepdims=True)
    acc_sc[...] = corr * acc_sc[...] + jnp.dot(
        p.astype(jnp.bfloat16), h_src_ref[...],
        preferred_element_type=jnp.float32)
    m_sc[...] = m_new

    @pl.when(kidx == pl.num_programs(1) - 1)
    def _():
        has_edge = has_edge_ref[...] > 0.0
        l_safe = jnp.where(has_edge, l_sc[...], 1.0)
        aggr = acc_sc[...] * pl.reciprocal(l_safe, approx=True)
        # Zero-in-degree targets get no messages (PyG 'add' aggregation).
        h_out = jnp.where(has_edge, jnp.maximum(aggr, 0.0), 0.0)   # relu
        # TODO(synk): F.dropout(p=0.2) is identity in eval mode; not applied.
        slab = jnp.dot(h_out.astype(jnp.bfloat16), wcat_ref[...],
                       preferred_element_type=jnp.float32) + bcat_ref[...]
        slab_ref[...] = slab.astype(slab_ref.dtype)


# --------------------------------------------------------------------------
# Kernel 2: TransformerConv (concat=False, root_weight) with online masked
#           softmax per head + skip + relu + zero-padded lane-dense fc.
# --------------------------------------------------------------------------
def transformer_fc_kernel(heads, h1, slab_row_ref, slab_src_ref, adj_ref,
                          has_edge_ref, wfc_ref, bfc_ref, out_ref,
                          m_sc, l_sc, acc_sc):
    kidx = pl.program_id(1)
    hh = heads * h1

    @pl.when(kidx == 0)
    def _():
        m_sc[...] = jnp.full_like(m_sc, NEG_INF)
        l_sc[...] = jnp.zeros_like(l_sc)
        acc_sc[...] = jnp.zeros_like(acc_sc)

    adj = adj_ref[...].astype(jnp.float32) > 0.0
    slab_row = slab_row_ref[...]                      # (TM, PAD) bf16
    slab_src = slab_src_ref[...]                      # (TK, PAD) bf16
    q = slab_row[:, 0:hh]                             # 1/sqrt(h1) already folded
    k = slab_src[:, hh:2 * hh]
    v = slab_src[:, 2 * hh:3 * hh]

    for hd in range(heads):                           # static unroll over heads
        qh = q[:, hd * h1:(hd + 1) * h1]
        kh = k[:, hd * h1:(hd + 1) * h1]
        vh = v[:, hd * h1:(hd + 1) * h1]
        logits = lax.dot_general(qh, kh, (((1,), (1,)), ((), ())),
                                 preferred_element_type=jnp.float32)
        m_old = m_sc[hd]
        m_new = jnp.maximum(
            m_old, jnp.max(jnp.where(adj, logits, NEG_INF), axis=-1,
                           keepdims=True))
        corr = jnp.exp(m_old - m_new)
        p = jnp.where(adj, jnp.exp(logits - m_new), 0.0)
        l_sc[hd] = corr * l_sc[hd] + jnp.sum(p, axis=-1, keepdims=True)
        acc_sc[hd] = corr * acc_sc[hd] + jnp.dot(
            p.astype(jnp.bfloat16), vh, preferred_element_type=jnp.float32)
        m_sc[hd] = m_new

    @pl.when(kidx == pl.num_programs(1) - 1)
    def _():
        has_edge = has_edge_ref[...] > 0.0
        acc = jnp.zeros((slab_row.shape[0], h1), jnp.float32)
        for hd in range(heads):
            l_safe = jnp.where(has_edge, l_sc[hd], 1.0)
            acc = acc + acc_sc[hd] * pl.reciprocal(l_safe, approx=True)
        attn = jnp.where(has_edge, acc * (1.0 / heads), 0.0)   # mean over heads
        skip = slab_row[:, 3 * hh:3 * hh + h1].astype(jnp.float32)
        out_t = jnp.maximum(attn + skip, 0.0)                  # skip + relu
        # TODO(synk): second F.dropout(p=0.2) is identity in eval mode.
        out = jnp.dot(out_t.astype(jnp.bfloat16), wfc_ref[...],
                      preferred_element_type=jnp.float32) + bfc_ref[...]
        out_ref[...] = out.astype(out_ref.dtype)


# --------------------------------------------------------------------------
# Wrapper
# --------------------------------------------------------------------------
def hybrid_gnn_forward(x, edge_index, cew, params, *, heads, h1, out_dim,
                       block_rows=None, block_src=None):
    n, d_in = x.shape
    h0 = params["w1"].shape[1]
    hh = heads * h1
    pad1 = _round_up(3 * hh + h1, 128)
    pad_out = _round_up(out_dim, 128)

    cap = _vmem_capacity_bytes()
    vmem_limit = int(0.75 * cap)
    budget = int(0.6 * vmem_limit)
    tk = block_src if block_src is not None else _pick_src_tile(n)
    tm = block_rows if block_rows is not None else _pick_row_tile(
        n, tk, h0, pad1, pad_out, heads, h1, budget)
    assert n % tm == 0 and n % tk == 0
    n_i, n_k = n // tm, n // tk

    # ---- graph glue: compact int8 adjacency + in-degree mask ---------------
    # TODO(synk): bit-pack the adjacency to uint32 (N*N/8 bytes) for very
    # large graphs; int8 already halves the mask DMA vs. a bf16 additive mask.
    src, dst = edge_index[0], edge_index[1]
    adj = jnp.zeros((n, n), jnp.int8).at[dst, src].set(1)   # adj[i,j]: edge j->i
    in_deg = jnp.zeros((n,), jnp.float32).at[dst].add(1.0)
    has_edge = (in_deg > 0).astype(jnp.float32).reshape(n, 1)

    cew = cew.astype(jnp.float32)
    cew_col = cew.reshape(n, 1)
    cew_row = cew.reshape(1, n)
    x_bf = x.astype(jnp.bfloat16)

    # Fused [q*scale | k | v | skip | pad] projection (attention scale folded).
    scale = 1.0 / (float(h1) ** 0.5)
    wcat = jnp.zeros((h0, pad1), jnp.float32)
    wcat = wcat.at[:, 0:hh].set(params["wq"] * scale)
    wcat = wcat.at[:, hh:2 * hh].set(params["wk"])
    wcat = wcat.at[:, 2 * hh:3 * hh].set(params["wv"])
    wcat = wcat.at[:, 3 * hh:3 * hh + h1].set(params["wskip"])
    bcat = jnp.zeros((1, pad1), jnp.float32)
    bcat = bcat.at[:, 0:hh].set(params["bq"] * scale)
    bcat = bcat.at[:, hh:2 * hh].set(params["bk"])
    bcat = bcat.at[:, 2 * hh:3 * hh].set(params["bv"])
    bcat = bcat.at[:, 3 * hh:3 * hh + h1].set(params["bskip"])

    wfc_pad = jnp.zeros((h1, pad_out), jnp.float32).at[:, :out_dim].set(
        params["wfc"]).astype(jnp.bfloat16)
    bfc_pad = jnp.zeros((1, pad_out), jnp.float32).at[:, :out_dim].set(
        params["bfc"])

    cp1 = pltpu.CompilerParams(dimension_semantics=("parallel",),
                               vmem_limit_bytes=vmem_limit)
    cp2 = pltpu.CompilerParams(dimension_semantics=("parallel", "arbitrary"),
                               vmem_limit_bytes=vmem_limit)

    # ---- kernel 0: hoisted lin(x) + attention score s (grid-invariant) -----
    h_all, s_all = pl.pallas_call(
        lin_proj_kernel,
        grid=(n_i,),
        in_specs=[pl.BlockSpec((tm, d_in), lambda i: (i, 0)),
                  pl.BlockSpec((d_in, h0), lambda i: (0, 0)),
                  pl.BlockSpec((1, h0), lambda i: (0, 0)),
                  pl.BlockSpec((1, h0), lambda i: (0, 0))],
        out_specs=(pl.BlockSpec((tm, h0), lambda i: (i, 0)),
                   pl.BlockSpec((tm, 1), lambda i: (i, 0))),
        out_shape=(jax.ShapeDtypeStruct((n, h0), jnp.bfloat16),
                   jax.ShapeDtypeStruct((n, 1), jnp.float32)),
        compiler_params=cp1,
    )(x_bf, params["w1"].astype(jnp.bfloat16), params["b1"], params["att"])

    s_col = s_all                # (N, 1)  target-side score
    s_row = s_all.reshape(1, n)  # (1, N)  source-side score

    ce1 = pl.CostEstimate(
        flops=int(2 * n * n * h0 + 14 * n * n + 2 * n * h0 * pad1),
        transcendentals=int(n * n + 2 * n * n_k),
        bytes_accessed=int(n * n + n_i * n * h0 * 2 + n * pad1 * 2
                           + n * h0 * 2 + 16 * n))
    ce2 = pl.CostEstimate(
        flops=int(4 * heads * n * n * h1 + 10 * heads * n * n
                  + 2 * n * h1 * pad_out),
        transcendentals=int(heads * (n * n + 2 * n * n_k)),
        bytes_accessed=int(n * n + (n_i + 1) * n * pad1 * 2
                           + n * pad_out * 4 + 8 * n))

    # ---- kernel 1: CEW-GAT + fused projection ------------------------------
    slab = pl.pallas_call(
        cew_gat_kernel,
        grid=(n_i, n_k),
        in_specs=[pl.BlockSpec((tm, h0), lambda i, k: (i, 0)),    # h (targets)
                  pl.BlockSpec((tk, h0), lambda i, k: (k, 0)),    # h (sources)
                  pl.BlockSpec((tm, 1), lambda i, k: (i, 0)),     # s_i
                  pl.BlockSpec((1, tk), lambda i, k: (0, k)),     # s_j
                  pl.BlockSpec((tm, 1), lambda i, k: (i, 0)),     # cew_i
                  pl.BlockSpec((1, tk), lambda i, k: (0, k)),     # cew_j
                  pl.BlockSpec((tm, tk), lambda i, k: (i, k)),    # adjacency
                  pl.BlockSpec((tm, 1), lambda i, k: (i, 0)),     # has_edge
                  pl.BlockSpec((h0, pad1), lambda i, k: (0, 0)),  # wcat
                  pl.BlockSpec((1, pad1), lambda i, k: (0, 0))],  # bcat
        out_specs=pl.BlockSpec((tm, pad1), lambda i, k: (i, 0)),
        out_shape=jax.ShapeDtypeStruct((n, pad1), jnp.bfloat16),
        scratch_shapes=[pltpu.VMEM((tm, 1), jnp.float32),
                        pltpu.VMEM((tm, 1), jnp.float32),
                        pltpu.VMEM((tm, h0), jnp.float32)],
        compiler_params=cp2,
        cost_estimate=ce1,
    )(h_all, h_all, s_col, s_row, cew_col, cew_row, adj, has_edge,
      wcat.astype(jnp.bfloat16), bcat)

    # ---- kernel 2: TransformerConv + skip + relu + fc -----------------------
    out_pad = pl.pallas_call(
        functools.partial(transformer_fc_kernel, heads, h1),
        grid=(n_i, n_k),
        in_specs=[pl.BlockSpec((tm, pad1), lambda i, k: (i, 0)),    # q / skip
                  pl.BlockSpec((tk, pad1), lambda i, k: (k, 0)),    # k / v
                  pl.BlockSpec((tm, tk), lambda i, k: (i, k)),      # adjacency
                  pl.BlockSpec((tm, 1), lambda i, k: (i, 0)),       # has_edge
                  pl.BlockSpec((h1, pad_out), lambda i, k: (0, 0)),
                  pl.BlockSpec((1, pad_out), lambda i, k: (0, 0))],
        out_specs=pl.BlockSpec((tm, pad_out), lambda i, k: (i, 0)),
        out_shape=jax.ShapeDtypeStruct((n, pad_out), jnp.float32),
        scratch_shapes=[pltpu.VMEM((heads, tm, 1), jnp.float32),
                        pltpu.VMEM((heads, tm, 1), jnp.float32),
                        pltpu.VMEM((heads, tm, h1), jnp.float32)],
        compiler_params=cp2,
        cost_estimate=ce2,
    )(slab, slab, adj, has_edge, wfc_pad, bfc_pad)

    return out_pad[:, :out_dim]


# --------------------------------------------------------------------------
# Parameter construction (mirrors the PyTorch module's initializers).
# --------------------------------------------------------------------------
def make_params(key, d_in, h0, h1, heads, d_out):
    ks = jax.random.split(key, 8)

    def lin(k, fan_in, fan_out):
        bound = 1.0 / (fan_in ** 0.5)
        kw, kb = jax.random.split(k)
        w = jax.random.uniform(kw, (fan_in, fan_out), jnp.float32, -bound, bound)
        b = jax.random.uniform(kb, (1, fan_out), jnp.float32, -bound, bound)
        return w, b

    w1, b1 = lin(ks[0], d_in, h0)
    a = 1.414 * (6.0 / (1 + h0)) ** 0.5           # xavier_uniform, gain=1.414
    att = jax.random.uniform(ks[1], (1, h0), jnp.float32, -a, a)
    wq, bq = lin(ks[2], h0, heads * h1)
    wk, bk = lin(ks[3], h0, heads * h1)
    wv, bv = lin(ks[4], h0, heads * h1)
    wskip, bskip = lin(ks[5], h0, h1)
    wfc, _ = lin(ks[6], h1, d_out)
    bfc = jnp.zeros((1, d_out), jnp.float32)      # fc bias zero-initialized
    return dict(w1=w1, b1=b1, att=att, wq=wq, bq=bq, wk=wk, bk=bk, wv=wv, bv=bv,
                wskip=wskip, bskip=bskip, wfc=wfc, bfc=bfc)


if __name__ == "__main__":
    # Small but non-trivial graph: exercises a (2 row-tiles x 2 source-tiles)
    # grid, so the online-softmax accumulation path over source tiles runs.
    N, D_IN, H0, H1, D_OUT, HEADS = 256, 16, 32, 32, 4, 4

    key = jax.random.PRNGKey(0)
    kx, kc, kp = jax.random.split(key, 3)

    x = jax.random.normal(kx, (N, D_IN), jnp.float32)
    cew = jax.random.uniform(kc, (N,), jnp.float32)       # per-node edge-weight feature

    # Ring graph with self loops: every node has incoming edges.
    idx = jnp.arange(N, dtype=jnp.int32)
    src = jnp.concatenate([idx, idx, (idx + 1) % N])
    dst = jnp.concatenate([idx, (idx + 1) % N, idx])
    edge_index = jnp.stack([src, dst], axis=0)            # [2, E], row 0 = src, row 1 = dst

    params = make_params(kp, D_IN, H0, H1, HEADS, D_OUT)

    out = hybrid_gnn_forward(x, edge_index, cew, params,
                             heads=HEADS, h1=H1, out_dim=D_OUT)
    jax.block_until_ready(out)
    assert out.shape == (N, D_OUT)
    assert bool(jnp.all(jnp.isfinite(out)))
    print("KERNEL_OK")
</pallas_src>

<mosaic_0001>
module attributes {stable_mosaic.version = 11 : i64} {
  func.func @lin_proj_kernel(%arg0: i32, %arg1: memref<128x16xbf16, #tpu.memory_space<vmem>>, %arg2: memref<16x32xbf16, #tpu.memory_space<vmem>>, %arg3: memref<1x32xf32, #tpu.memory_space<vmem>>, %arg4: memref<1x32xf32, #tpu.memory_space<vmem>>, %arg5: memref<128x32xbf16, #tpu.memory_space<vmem>>, %arg6: memref<128x1xf32, #tpu.memory_space<vmem>>) attributes {dimension_semantics = [#tpu.dimension_semantics<parallel>], iteration_bounds = array<i64: 2>, scalar_prefetch = 0 : i64, scratch_operands = 0 : i64, tpu.core_type = #tpu.core_type<tc>, window_params = [{transform_indices = @transform_0, window_bounds = array<i64: 128, 16>}, {pipeline_mode = #tpu.pipeline_mode<synchronous>, transform_indices = @transform_1, window_bounds = array<i64: 16, 32>}, {pipeline_mode = #tpu.pipeline_mode<synchronous>, transform_indices = @transform_2, window_bounds = array<i64: 1, 32>}, {pipeline_mode = #tpu.pipeline_mode<synchronous>, transform_indices = @transform_3, window_bounds = array<i64: 1, 32>}, {transform_indices = @transform_4, window_bounds = array<i64: 128, 32>}, {transform_indices = @transform_5, window_bounds = array<i64: 128, 1>}]} {
    %c0 = arith.constant 0 : index
    %c0_0 = arith.constant 0 : index
    %0 = vector.load %arg1[%c0, %c0_0] : memref<128x16xbf16, #tpu.memory_space<vmem>>, vector<128x16xbf16>
    %c0_1 = arith.constant 0 : index
    %c0_2 = arith.constant 0 : index
    %1 = vector.load %arg2[%c0_1, %c0_2] : memref<16x32xbf16, #tpu.memory_space<vmem>>, vector<16x32xbf16>
    %cst = arith.constant dense<0.000000e+00> : vector<128x32xf32>
    %2 = tpu.matmul %0, %1, %cst {dimension_numbers = #tpu.dot_dimension_numbers<[1], [0], [0], [1], [0, 0, 1, 1], [], []>} : vector<128x16xbf16>, vector<16x32xbf16>, vector<128x32xf32> -> vector<128x32xf32>
    %c0_3 = arith.constant 0 : index
    %c0_4 = arith.constant 0 : index
    %3 = vector.load %arg3[%c0_3, %c0_4] : memref<1x32xf32, #tpu.memory_space<vmem>>, vector<1x32xf32>
    %4 = vector.broadcast %3 : vector<1x32xf32> to vector<128x32xf32>
    %5 = arith.addf %2, %4 : vector<128x32xf32>
    %6 = arith.truncf %5 : vector<128x32xf32> to vector<128x32xbf16>
    %c0_5 = arith.constant 0 : index
    %c0_6 = arith.constant 0 : index
    %7 = vector.load %arg5[%c0_5, %c0_6] : memref<128x32xbf16, #tpu.memory_space<vmem>>, vector<128x32xbf16>
    tpu.vector_store %arg5[%c0_5, %c0_6], %6 {strides = array<i32>} : memref<128x32xbf16, #tpu.memory_space<vmem>>, vector<128x32xbf16>,
    %c0_7 = arith.constant 0 : index
    %c0_8 = arith.constant 0 : index
    %8 = vector.load %arg4[%c0_7, %c0_8] : memref<1x32xf32, #tpu.memory_space<vmem>>, vector<1x32xf32>
    %9 = vector.broadcast %8 : vector<1x32xf32> to vector<128x32xf32>
    %10 = arith.mulf %5, %9 : vector<128x32xf32>
    %cst_9 = arith.constant dense<0.000000e+00> : vector<128xf32>
    %11 = vector.multi_reduction <add>, %10, %cst_9 [1] : vector<128x32xf32> to vector<128xf32>
    %12 = vector.shape_cast %11 : vector<128xf32> to vector<128x1xf32>
    %c0_10 = arith.constant 0 : index
    %c0_11 = arith.constant 0 : index
    %13 = vector.load %arg6[%c0_10, %c0_11] : memref<128x1xf32, #tpu.memory_space<vmem>>, vector<128x1xf32>
    tpu.vector_store %arg6[%c0_10, %c0_11], %12 {strides = array<i32>} : memref<128x1xf32, #tpu.memory_space<vmem>>, vector<128x1xf32>,
    return
  }
  func.func @transform_0(%arg0: i32) -> (i32, i32) {
    %c0_i32 = arith.constant 0 : i32
    %c0_i32_0 = arith.constant 0 : i32
    return %arg0, %c0_i32 : i32, i32
  }
  func.func @transform_1(%arg0: i32) -> (i32, i32) {
    %c0_i32 = arith.constant 0 : i32
    %c0_i32_0 = arith.constant 0 : i32
    %c0_i32_1 = arith.constant 0 : i32
    return %c0_i32, %c0_i32_0 : i32, i32
  }
  func.func @transform_2(%arg0: i32) -> (i32, i32) {
    %c0_i32 = arith.constant 0 : i32
    %c0_i32_0 = arith.constant 0 : i32
    %c0_i32_1 = arith.constant 0 : i32
    return %c0_i32, %c0_i32_0 : i32, i32
  }
  func.func @transform_3(%arg0: i32) -> (i32, i32) {
    %c0_i32 = arith.constant 0 : i32
    %c0_i32_0 = arith.constant 0 : i32
    %c0_i32_1 = arith.constant 0 : i32
    return %c0_i32, %c0_i32_0 : i32, i32
  }
  func.func @transform_4(%arg0: i32) -> (i32, i32) {
    %c0_i32 = arith.constant 0 : i32
    %c0_i32_0 = arith.constant 0 : i32
    return %arg0, %c0_i32 : i32, i32
  }
  func.func @transform_5(%arg0: i32) -> (i32, i32) {
    %c0_i32 = arith.constant 0 : i32
    %c0_i32_0 = arith.constant 0 : i32
    return %arg0, %c0_i32 : i32, i32
  }
}

</mosaic_0001>

<llo_original>
// kernel: tpu_custom_call.1
$region0: #{tpu_custom_call.1}
  #allocation0 [shape = 'u32[]', space=smem, size = 0x4, offset = 0x4, fixed_abs, tag = 'smem constant byte address 0x4 - core index']
  #allocation1 [shape = 'u32[144,128]{1,0:T(1,128)}', space=vmem, size = 0x12000, scoped, tag = 'internal scratch']
  %s0 = inlined_call_operand.vmem [shape: bf16[256,16], index: 0, kind: input, shape index: {}]
  %s1 = inlined_call_operand.vmem [shape: bf16[16,32], index: 1, kind: input, shape index: {}]
  %s2 = inlined_call_operand.vmem [shape: f32[1,32], index: 2, kind: input, shape index: {}]
  %s3 = inlined_call_operand.vmem [shape: f32[1,32], index: 3, kind: input, shape index: {}]
  %s4 = inlined_call_operand.vmem [shape: bf16[256,32], index: 4, kind: output, shape index: {0}]
  %s5 = inlined_call_operand.vmem [shape: f32[256,1], index: 5, kind: output, shape index: {1}]
  %6 = xla_tuple %s4, %s5
  %s7 = sld [smem:[#allocation0]]
  $region57: #{tpu_custom_call.1} parent=0
    _
  %s9 = ssub.s32 1, %s7
  %s10 = scalar_select 0, %s9, %s7
  loop: start=0, step=1, limit=4
  $region2: #{tpu_custom_call.1} parent=0 // loop_pre_header
    _
  $region3: #{tpu_custom_call.1} parent=0 // loop_header
    %s12 = sphi 0, %s16
    %p13 = scmp.ge.s32.totalorder %s12, 4
    %s22 = sphi 0, %s24
    %s25 = sphi 0, %s22
    %s26 = sphi 0, %s25
    %s42 = sphi 0, %s26
    %s46 = sphi 0, %s46
    %s48 = sphi 0, %s46
    %s49 = sphi 0, %s48
    %s63 = sphi 0, %s49
    %s67 = sphi 0, %s67
    %s69 = sphi 0, %s67
    %s70 = sphi 0, %s69
    %s84 = sphi 0, %s70
    %s88 = sphi 0, %s88
    %s90 = sphi 0, %s88
    %s91 = sphi 0, %s90
    %s105 = sphi 0, %s91
    %s111 = sphi 0, %s113
    %s114 = sphi 0, %s111
    %s115 = sphi 0, %s114
    %s131 = sphi 0, %s115
    %s137 = sphi 0, %s139
    %s140 = sphi 0, %s137
    %s141 = sphi 0, %s140
    %s157 = sphi 0, %s141
  $region4: #{tpu_custom_call.1} parent=0 // loop_header_branch
    %15 = sbr.rel (%p13) target = $region8
  $region5: #{tpu_custom_call.1} parent=0 // loop_body
    %s17 = ssub.s32 %s12, 1
    %s18 = ssub.s32 %s12, 2
    %s19 = sadd.s32 %s12, 1
    %s20 = ssub.s32 %s12, %s19
    %p21 = scmp.eq.s32.totalorder %s20, 0
    %s23 = sadd.s32 %s22, 1
    %s24 = scalar_select %p21, %s22, %s23
    %p27 = pneg %p21
    %p28 = scmp.eq.s32.totalorder %s12, 1
    %p29 = por %p27, %p28
    %p30 = scmp.ne.s32.totalorder %s22, %s25
    %p31 = scmp.eq.s32.totalorder %s12, 0
    %p32 = por %p30, %p31
    %p33 = scmp.ne.s32.totalorder %s22, %s25
    %p34 = scmp.eq.s32.totalorder %s17, 1
    %p35 = por %p33, %p34
    %p36 = scmp.ne.s32.totalorder %s25, %s26
    %p37 = scmp.eq.s32.totalorder %s17, 0
    %p38 = por %p36, %p37
    %p39 = scmp.ne.s32.totalorder %s25, %s26
    %p40 = scmp.eq.s32.totalorder %s18, 1
    %p41 = por %p39, %p40
    %p43 = scmp.ne.s32.totalorder %s26, %s42
    %p44 = scmp.eq.s32.totalorder %s18, 0
    %p45 = por %p43, %p44
    %s47 = sadd.s32 %s46, 1
    %p50 = scmp.eq.s32.totalorder %s12, 1
    %p51 = scmp.ne.s32.totalorder %s46, %s48
    %p52 = scmp.eq.s32.totalorder %s12, 0
    %p53 = por %p51, %p52
    %p54 = scmp.ne.s32.totalorder %s46, %s48
    %p55 = scmp.eq.s32.totalorder %s17, 1
    %p56 = por %p54, %p55
    %p57 = scmp.ne.s32.totalorder %s48, %s49
    %p58 = scmp.eq.s32.totalorder %s17, 0
    %p59 = por %p57, %p58
    %p60 = scmp.ne.s32.totalorder %s48, %s49
    %p61 = scmp.eq.s32.totalorder %s18, 1
    %p62 = por %p60, %p61
    %p64 = scmp.ne.s32.totalorder %s49, %s63
    %p65 = scmp.eq.s32.totalorder %s18, 0
    %p66 = por %p64, %p65
    %s68 = sadd.s32 %s67, 1
    %p71 = scmp.eq.s32.totalorder %s12, 1
    %p72 = scmp.ne.s32.totalorder %s67, %s69
    %p73 = scmp.eq.s32.totalorder %s12, 0
    %p74 = por %p72, %p73
    %p75 = scmp.ne.s32.totalorder %s67, %s69
    %p76 = scmp.eq.s32.totalorder %s17, 1
    %p77 = por %p75, %p76
    %p78 = scmp.ne.s32.totalorder %s69, %s70
    %p79 = scmp.eq.s32.totalorder %s17, 0
    %p80 = por %p78, %p79
    %p81 = scmp.ne.s32.totalorder %s69, %s70
    %p82 = scmp.eq.s32.totalorder %s18, 1
    %p83 = por %p81, %p82
    %p85 = scmp.ne.s32.totalorder %s70, %s84
    %p86 = scmp.eq.s32.totalorder %s18, 0
    %p87 = por %p85, %p86
    %s89 = sadd.s32 %s88, 1
    %p92 = scmp.eq.s32.totalorder %s12, 1
    %p93 = scmp.ne.s32.totalorder %s88, %s90
    %p94 = scmp.eq.s32.totalorder %s12, 0
    %p95 = por %p93, %p94
    %p96 = scmp.ne.s32.totalorder %s88, %s90
    %p97 = scmp.eq.s32.totalorder %s17, 1
    %p98 = por %p96, %p97
    %p99 = scmp.ne.s32.totalorder %s90, %s91
    %p100 = scmp.eq.s32.totalorder %s17, 0
    %p101 = por %p99, %p100
    %p102 = scmp.ne.s32.totalorder %s90, %s91
    %p103 = scmp.eq.s32.totalorder %s18, 1
    %p104 = por %p102, %p103
    %p106 = scmp.ne.s32.totalorder %s91, %s105
    %p107 = scmp.eq.s32.totalorder %s18, 0
    %p108 = por %p106, %p107
    %s109 = ssub.s32 %s12, %s19
    %p110 = scmp.eq.s32.totalorder %s109, 0
    %s112 = sadd.s32 %s111, 1
    %s113 = scalar_select %p110, %s111, %s112
    %p116 = pneg %p110
    %p117 = scmp.eq.s32.totalorder %s12, 1
    %p118 = por %p116, %p117
    %p119 = scmp.ne.s32.totalorder %s111, %s114
    %p120 = scmp.eq.s32.totalorder %s12, 0
    %p121 = por %p119, %p120
    %p122 = scmp.ne.s32.totalorder %s111, %s114
    %p123 = scmp.eq.s32.totalorder %s17, 1
    %p124 = por %p122, %p123
    %p125 = scmp.ne.s32.totalorder %s114, %s115
    %p126 = scmp.eq.s32.totalorder %s17, 0
    %p127 = por %p125, %p126
    %p128 = scmp.ne.s32.totalorder %s114, %s115
    %p129 = scmp.eq.s32.totalorder %s18, 1
    %p130 = por %p128, %p129
    %p132 = scmp.ne.s32.totalorder %s115, %s131
    %p133 = scmp.eq.s32.totalorder %s18, 0
    %p134 = por %p132, %p133
    %s135 = ssub.s32 %s12, %s19
    %p136 = scmp.eq.s32.totalorder %s135, 0
    %s138 = sadd.s32 %s137, 1
    %s139 = scalar_select %p136, %s137, %s138
    %p142 = pneg %p136
    %p143 = scmp.eq.s32.totalorder %s12, 1
    %p144 = por %p142, %p143
    %p145 = scmp.ne.s32.totalorder %s137, %s140
    %p146 = scmp.eq.s32.totalorder %s12, 0
    %p147 = por %p145, %p146
    %p148 = scmp.ne.s32.totalorder %s137, %s140
    %p149 = scmp.eq.s32.totalorder %s17, 1
    %p150 = por %p148, %p149
    %p151 = scmp.ne.s32.totalorder %s140, %s141
    %p152 = scmp.eq.s32.totalorder %s17, 0
    %p153 = por %p151, %p152
    %p154 = scmp.ne.s32.totalorder %s140, %s141
    %p155 = scmp.eq.s32.totalorder %s18, 1
    %p156 = por %p154, %p155
    %p158 = scmp.ne.s32.totalorder %s141, %s157
    %p159 = scmp.eq.s32.totalorder %s18, 0
    %p160 = por %p158, %p159
    %p161 = scmp.le.s32.totalorder 1, %s12
    %p162 = scmp.lt.s32.totalorder %s12, 3
    %p163 = pnand %p161, %p162
    %p164 = pneg %p163
    // Predicated region
    $region9: #{tpu_custom_call.1} parent=5 // pred_check
      _
    $region10: #{tpu_custom_call.1} parent=5 // pred_check_branch
      %166 = sbr.rel (%p163) target = $region12
    $region11: #{tpu_custom_call.1} parent=5 // pred_region
      %s167 = ssub.s32 %s12, 1
      // Predicated region
      $region13: #{tpu_custom_call.1} parent=11 // pred_check
        %p168 = pneg %p59
      $region14: #{tpu_custom_call.1} parent=11 // pred_check_branch
        %170 = sbr.rel (%p168) target = $region16
      $region15: #{tpu_custom_call.1} parent=11 // pred_region
        _
      $region16: #{tpu_custom_call.1} parent=11 // pred_fallthru
        _
      // Predicated region
      $region17: #{tpu_custom_call.1} parent=11 // pred_check
        %p171 = pneg %p80
      $region18: #{tpu_custom_call.1} parent=11 // pred_check_branch
        %173 = sbr.rel (%p171) target = $region20
      $region19: #{tpu_custom_call.1} parent=11 // pred_region
        _
      $region20: #{tpu_custom_call.1} parent=11 // pred_fallthru
        _
      // Predicated region
      $region21: #{tpu_custom_call.1} parent=11 // pred_check
        %p174 = pneg %p101
      $region22: #{tpu_custom_call.1} parent=11 // pred_check_branch
        %176 = sbr.rel (%p174) target = $region24
      $region23: #{tpu_custom_call.1} parent=11 // pred_region
        _
      $region24: #{tpu_custom_call.1} parent=11 // pred_fallthru
        _
    $region12: #{tpu_custom_call.1} parent=5 // pred_fallthru
      _
    %p177 = scmp.lt.s32.totalorder %s12, 2
    // Predicated region
    $region25: #{tpu_custom_call.1} parent=5 // pred_check
      %p178 = pneg %p177
    $region26: #{tpu_custom_call.1} parent=5 // pred_check_branch
      %180 = sbr.rel (%p178) target = $region28
    $region27: #{tpu_custom_call.1} parent=5 // pred_region
      // Predicated region
      $region29: #{tpu_custom_call.1} parent=27 // pred_check
        %p181 = pneg %p32
      $region30: #{tpu_custom_call.1} parent=27 // pred_check_branch
        %183 = sbr.rel (%p181) target = $region32
      $region31: #{tpu_custom_call.1} parent=27 // pred_region
        %s184 = smul.u32 16, %s12
        %p185 = scmp.lt.s32.totalorder %s184, 31
        %s186 = scalar_select %p185, %s184, 31
        %s187 = smul.addr %s186, 4
        %s188 = scalar_lea.vmem %s0, %s187
        %s189 = smul.u32 16, %s12
      $region32: #{tpu_custom_call.1} parent=27 // pred_fallthru
        _
    $region28: #{tpu_custom_call.1} parent=5 // pred_fallthru
      _
    %p190 = scmp.le.s32.totalorder 1, %s12
    %p191 = scmp.lt.s32.totalorder %s12, 3
    %p192 = pnand %p190, %p191
    %p193 = pneg %p192
    // Predicated region
    $region33: #{tpu_custom_call.1} parent=5 // pred_check
      _
    $region34: #{tpu_custom_call.1} parent=5 // pred_check_branch
      %195 = sbr.rel (%p192) target = $region36
    $region35: #{tpu_custom_call.1} parent=5 // pred_region
      %s196 = ssub.s32 %s12, 1
      %s197 = smul.u32 16, %s17
      %p198 = scmp.lt.s32.totalorder %s197, 31
      %s199 = scalar_select %p198, %s197, 31
      %s200 = smul.addr %s199, 4
      %s201 = scalar_lea.vmem %s0, %s200
      %p202 = pneg %p38
      %p203 = pneg %p35
      %p204 = pneg %p59
      %p205 = pneg %p56
      %p206 = pneg %p80
      %p207 = pneg %p77
      %p208 = pneg %p101
      %p209 = pneg %p98
      %p210 = pneg %p127
      %p211 = pneg %p124
      %s212 = smul.u32 16, %s17
      %p213 = scmp.lt.s32.totalorder %s212, 31
      %s214 = scalar_select %p213, %s212, 31
      %s215 = smul.addr %s214, 4
      %s216 = scalar_lea.vmem %s4, %s215
      %p217 = pneg %p153
      %p218 = pneg %p150
      %s219 = smul.u32 16, %s17
      %p220 = scmp.lt.s32.totalorder %s219, 31
      %s221 = scalar_select %p220, %s219, 31
      %s222 = smul.addr %s221, 8
      %s223 = scalar_lea.vmem %s5, %s222
      %s224 = smul.u32 16, %s17
      %p225 = scmp.lt.s32.totalorder %s224, 31
      %s226 = scalar_select %p225, %s224, 31
      %s227 = smul.addr %s226, 4
      %s228 = scalar_lea.vmem %s0, %s227
      %s229 = smul.u32 16, %s17
      %s230 = smul.u32 16, %s17
      %p231 = scmp.lt.s32.totalorder %s230, 31
      %s232 = scalar_select %p231, %s230, 31
      %s233 = smul.addr %s232, 4
      %s234 = scalar_lea.vmem %s4, %s233
      %s235 = smul.u32 16, %s17
      %s236 = smul.u32 16, %s17
      %p237 = scmp.lt.s32.totalorder %s236, 31
      %s238 = scalar_select %p237, %s236, 31
      %s239 = smul.addr %s238, 8
      %s240 = scalar_lea.vmem %s5, %s239
      %s241 = smul.u32 16, %s17
      %v243 = vld [vmem:[%s228] sm:$0xf]
      %v244 = vld [vmem:[%s228 + $0x4] sm:$0xf]
      %v245 = vld [vmem:[%s228 + $0x8] sm:$0xf]
      %v246 = vld [vmem:[%s228 + $0xc] sm:$0xf]
      %v247 = vld [vmem:[%s228 + $0x10] sm:$0xf]
      %v248 = vld [vmem:[%s228 + $0x14] sm:$0xf]
      %v249 = vld [vmem:[%s228 + $0x18] sm:$0xf]
      %v250 = vld [vmem:[%s228 + $0x1c] sm:$0xf]
      %v251 = vld [vmem:[%s228 + $0x20] sm:$0xf]
      %v252 = vld [vmem:[%s228 + $0x24] sm:$0xf]
      %v253 = vld [vmem:[%s228 + $0x28] sm:$0xf]
      %v254 = vld [vmem:[%s228 + $0x2c] sm:$0xf]
      %v255 = vld [vmem:[%s228 + $0x30] sm:$0xf]
      %v256 = vld [vmem:[%s228 + $0x34] sm:$0xf]
      %v257 = vld [vmem:[%s228 + $0x38] sm:$0xf]
      %v258 = vld [vmem:[%s228 + $0x3c] sm:$0xf]
      %v259 = vld [vmem:[%s1] sm:$0xf]
      %v260 = vld [vmem:[%s1 + $0x4] sm:$0xf]
      %v261 = vld [vmem:[%s2] sm:$0x1]
      %v263 = vlaneseq
      %v264 = vshrl.u32 %v263, 7
      %v265 = vsub.s32 0, %v264
      %v266 = vrot.slane %v261, %v265
      %v284 = vunpack.c.l.b16 %v243
      %v285 = vunpack.c.l.b16 %v244
      %v286 = vunpack.c.l.b16 %v245
      %v287 = vunpack.c.l.b16 %v246
      %v288 = vunpack.c.l.b16 %v247
      %v289 = vunpack.c.l.b16 %v248
      %v290 = vunpack.c.l.b16 %v249
      %v291 = vunpack.c.l.b16 %v250
      %v292 = vunpack.c.l.b16 %v251
      %v293 = vunpack.c.l.b16 %v252
      %v294 = vunpack.c.l.b16 %v253
      %v295 = vunpack.c.l.b16 %v254
      %v296 = vunpack.c.l.b16 %v255
      %v297 = vunpack.c.l.b16 %v256
      %v298 = vunpack.c.l.b16 %v257
      %v299 = vunpack.c.l.b16 %v258
      %v300 = vpack.c.b16 %v285, %v284
      %v301 = vpack.c.b16 %v287, %v286
      %v302 = vpack.c.b16 %v289, %v288
      %v303 = vpack.c.b16 %v291, %v290
      %v304 = vpack.c.b16 %v293, %v292
      %v305 = vpack.c.b16 %v295, %v294
      %v306 = vpack.c.b16 %v297, %v296
      %v307 = vpack.c.b16 %v299, %v298
      %v310 = vunpack.c.l.b16 %v259
      %v311 = vunpack.c.l.b16 %v260
      %v312 = vpack.c.b16 %v311, %v310
      %vm314 = vcmask 130048
      %v316 = vsel %vm314, %v300, 0
      %v319 = vsel %vm314, %v301, 0
      %v322 = vsel %vm314, %v302, 0
      %v325 = vsel %vm314, %v303, 0
      %v328 = vsel %vm314, %v304, 0
      %v331 = vsel %vm314, %v305, 0
      %v334 = vsel %vm314, %v306, 0
      %v337 = vsel %vm314, %v307, 0
      %339 = vmatprep.subr.bf16.mxu0 0
      %340 = vmatpush1.bf16.msra.mxu0 %v312
      %341 = vmatprep.subr.bf16.mxu0 0
      %342 = vmatpush1.bf16.msra.mxu0 0
      %343 = vmatprep.subr.bf16.mxu0 0
      %344 = vmatpush1.bf16.msra.mxu0 0
      %345 = vmatprep.subr.bf16.mxu0 0
      %346 = vmatpush1.bf16.msra.mxu0 0
      %347 = vmatprep.subr.bf16.mxu0 0
      %348 = vmatpush1.bf16.msra.mxu0 0
      %349 = vmatprep.subr.bf16.mxu0 0
      %350 = vmatpush1.bf16.msra.mxu0 0
      %351 = vmatprep.subr.bf16.mxu0 0
      %352 = vmatpush1.bf16.msra.mxu0 0
      %353 = vmatprep.subr.bf16.mxu0 0
      %354 = vmatpush1.bf16.msra.mxu0 0
      %355 = vmatprep.subr.bf16.mxu0 0
      %356 = vmatpush1.bf16.msra.mxu0 0
      %357 = vmatprep.subr.bf16.mxu0 0
      %358 = vmatpush1.bf16.msra.mxu0 0
      %359 = vmatprep.subr.bf16.mxu0 0
      %360 = vmatpush1.bf16.msra.mxu0 0
      %361 = vmatprep.subr.bf16.mxu0 0
      %362 = vmatpush1.bf16.msra.mxu0 0
      %363 = vmatprep.subr.bf16.mxu0 0
      %364 = vmatpush1.bf16.msra.mxu0 0
      %365 = vmatprep.subr.bf16.mxu0 0
      %366 = vmatpush1.bf16.msra.mxu0 0
      %367 = vmatprep.subr.bf16.mxu0 0
      %368 = vmatpush1.bf16.msra.mxu0 0
      %369 = vmatprep.subr.bf16.mxu0 0
      %370 = vmatpush1.bf16.msra.mxu0 0
      %371 = vmatprep.mubr.bf16.mxu0 0
      %372 = vmatmul.mubr.bf16.gmra.mrb[0].mxu0 %v316
      %v373 = vpop.f32.mrb[0].mxu0
      %v374 = vadd.f32 %v266, %v373
      %v375 = vpop.f32.mrb[0].mxu0
      %v376 = vpop.f32.mrb[0].mxu0
      %v377 = vadd.f32 %v266, %v376
      %v378 = vpop.f32.mrb[0].mxu0
      %379 = vmatprep.mubr.bf16.mxu0 0
      %380 = vmatmul.mubr.bf16.gmra.mrb[0].mxu0 %v319
      %v381 = vpop.f32.mrb[0].mxu0
      %v382 = vadd.f32 %v266, %v381
      %v383 = vpop.f32.mrb[0].mxu0
      %v384 = vpop.f32.mrb[0].mxu0
      %v385 = vadd.f32 %v266, %v384
      %v386 = vpop.f32.mrb[0].mxu0
      %387 = vmatprep.mubr.bf16.mxu0 0
      %388 = vmatmul.mubr.bf16.gmra.mrb[0].mxu0 %v322
      %v389 = vpop.f32.mrb[0].mxu0
      %v390 = vadd.f32 %v266, %v389
      %v391 = vpop.f32.mrb[0].mxu0
      %v392 = vpop.f32.mrb[0].mxu0
      %v393 = vadd.f32 %v266, %v392
      %v394 = vpop.f32.mrb[0].mxu0
      %395 = vmatprep.mubr.bf16.mxu0 0
      %396 = vmatmul.mubr.bf16.gmra.mrb[0].mxu0 %v325
      %v397 = vpop.f32.mrb[0].mxu0
      %v398 = vadd.f32 %v266, %v397
      %v399 = vpop.f32.mrb[0].mxu0
      %v400 = vpop.f32.mrb[0].mxu0
      %v401 = vadd.f32 %v266, %v400
      %v402 = vpop.f32.mrb[0].mxu0
      %403 = vmatprep.mubr.bf16.mxu0 0
      %404 = vmatmul.mubr.bf16.gmra.mrb[0].mxu0 %v328
      %v405 = vpop.f32.mrb[0].mxu0
      %v406 = vadd.f32 %v266, %v405
      %v407 = vpop.f32.mrb[0].mxu0
      %v408 = vpop.f32.mrb[0].mxu0
      %v409 = vadd.f32 %v266, %v408
      %v410 = vpop.f32.mrb[0].mxu0
      %411 = vmatprep.mubr.bf16.mxu0 0
      %412 = vmatmul.mubr.bf16.gmra.mrb[0].mxu0 %v331
      %v413 = vpop.f32.mrb[0].mxu0
      %v414 = vadd.f32 %v266, %v413
      %v415 = vpop.f32.mrb[0].mxu0
      %v416 = vpop.f32.mrb[0].mxu0
      %v417 = vadd.f32 %v266, %v416
      %v418 = vpop.f32.mrb[0].mxu0
      %419 = vmatprep.mubr.bf16.mxu0 0
      %420 = vmatmul.mubr.bf16.gmra.mrb[0].mxu0 %v334
      %v421 = vpop.f32.mrb[0].mxu0
      %v422 = vadd.f32 %v266, %v421
      %v423 = vpop.f32.mrb[0].mxu0
      %v424 = vpop.f32.mrb[0].mxu0
      %v425 = vadd.f32 %v266, %v424
      %v426 = vpop.f32.mrb[0].mxu0
      %427 = vmatprep.mubr.bf16.mxu0 0
      %428 = vmatmul.mubr.bf16.gmra.mrb[0].mxu0 %v337
      %v429 = vpop.f32.mrb[0].mxu0
      %v430 = vadd.f32 %v266, %v429
      %v431 = vpop.f32.mrb[0].mxu0
      %v432 = vpop.f32.mrb[0].mxu0
      %v433 = vadd.f32 %v266, %v432
      %v434 = vpop.f32.mrb[0].mxu0
      %435 = vdwg.mxu0
      %v436 = vpack.c.bf16 %v377, %v374
      %v437 = vpack.c.bf16 %v385, %v382
      %v438 = vpack.c.bf16 %v393, %v390
      %v439 = vpack.c.bf16 %v401, %v398
      %v440 = vpack.c.bf16 %v409, %v406
      %v441 = vpack.c.bf16 %v417, %v414
      %v442 = vpack.c.bf16 %v425, %v422
      %v443 = vpack.c.bf16 %v433, %v430
      %v452 = vunpack.c.l.b16 %v436
      %v453 = vunpack.c.h.b16 %v436
      %v454 = vunpack.c.l.b16 %v437
      %v455 = vunpack.c.h.b16 %v437
      %v456 = vunpack.c.l.b16 %v438
      %v457 = vunpack.c.h.b16 %v438
      %v458 = vunpack.c.l.b16 %v439
      %v459 = vunpack.c.h.b16 %v439
      %v460 = vunpack.c.l.b16 %v440
      %v461 = vunpack.c.h.b16 %v440
      %v462 = vunpack.c.l.b16 %v441
      %v463 = vunpack.c.h.b16 %v441
      %v464 = vunpack.c.l.b16 %v442
      %v465 = vunpack.c.h.b16 %v442
      %v466 = vunpack.c.l.b16 %v443
      %v467 = vunpack.c.h.b16 %v443
      %v468 = vpack.c.b16 %v452, %v452
      %v469 = vpack.c.b16 %v453, %v453
      %v470 = vpack.c.b16 %v454, %v454
      %v471 = vpack.c.b16 %v455, %v455
      %v472 = vpack.c.b16 %v456, %v456
      %v473 = vpack.c.b16 %v457, %v457
      %v474 = vpack.c.b16 %v458, %v458
      %v475 = vpack.c.b16 %v459, %v459
      %v476 = vpack.c.b16 %v460, %v460
      %v477 = vpack.c.b16 %v461, %v461
      %v478 = vpack.c.b16 %v462, %v462
      %v479 = vpack.c.b16 %v463, %v463
      %v480 = vpack.c.b16 %v464, %v464
      %v481 = vpack.c.b16 %v465, %v465
      %v482 = vpack.c.b16 %v466, %v466
      %v483 = vpack.c.b16 %v467, %v467
      %vm500 = vcmask 257024
      %501 = vst.msk [vmem:[%s234] sm:$0xf] %vm500, %v468
      %502 = vst.msk [vmem:[%s234 + $0x4] sm:$0xf] %vm500, %v469
      %503 = vst.msk [vmem:[%s234 + $0x8] sm:$0xf] %vm500, %v470
      %504 = vst.msk [vmem:[%s234 + $0xc] sm:$0xf] %vm500, %v471
      %505 = vst.msk [vmem:[%s234 + $0x10] sm:$0xf] %vm500, %v472
      %506 = vst.msk [vmem:[%s234 + $0x14] sm:$0xf] %vm500, %v473
      %507 = vst.msk [vmem:[%s234 + $0x18] sm:$0xf] %vm500, %v474
      %508 = vst.msk [vmem:[%s234 + $0x1c] sm:$0xf] %vm500, %v475
      %509 = vst.msk [vmem:[%s234 + $0x20] sm:$0xf] %vm500, %v476
      %510 = vst.msk [vmem:[%s234 + $0x24] sm:$0xf] %vm500, %v477
      %511 = vst.msk [vmem:[%s234 + $0x28] sm:$0xf] %vm500, %v478
      %512 = vst.msk [vmem:[%s234 + $0x2c] sm:$0xf] %vm500, %v479
      %513 = vst.msk [vmem:[%s234 + $0x30] sm:$0xf] %vm500, %v480
      %514 = vst.msk [vmem:[%s234 + $0x34] sm:$0xf] %vm500, %v481
      %515 = vst.msk [vmem:[%s234 + $0x38] sm:$0xf] %vm500, %v482
      %516 = vst.msk [vmem:[%s234 + $0x3c] sm:$0xf] %vm500, %v483
      %v517 = vld [vmem:[%s3] sm:$0x1]
      %v519 = vlaneseq
      %v520 = vshrl.u32 %v519, 7
      %v521 = vsub.s32 0, %v520
      %v522 = vrot.slane %v517, %v521
      %v524 = vmul.f32 %v374, %v522
      %v525 = vmul.f32 %v377, %v522
      %v526 = vmul.f32 %v382, %v522
      %v527 = vmul.f32 %v385, %v522
      %v528 = vmul.f32 %v390, %v522
      %v529 = vmul.f32 %v393, %v522
      %v530 = vmul.f32 %v398, %v522
      %v531 = vmul.f32 %v401, %v522
      %v532 = vmul.f32 %v406, %v522
      %v533 = vmul.f32 %v409, %v522
      %v534 = vmul.f32 %v414, %v522
      %v535 = vmul.f32 %v417, %v522
      %v536 = vmul.f32 %v422, %v522
      %v537 = vmul.f32 %v425, %v522
      %v538 = vmul.f32 %v430, %v522
      %v539 = vmul.f32 %v433, %v522
      %vm540 = vcmask 261120
      %v541 = vsel %vm540, %v524, 0.0
      %542 = vadd.xlane.f32.xlu0 %v541
      %v543 = vpop.xlane.xlu0 %542
      %v544 = vsel %vm540, %v525, 0.0
      %545 = vadd.xlane.f32.xlu0 %v544
      %v546 = vpop.xlane.xlu0 %545
      %v547 = vsel %vm540, %v526, 0.0
      %548 = vadd.xlane.f32.xlu0 %v547
      %v549 = vpop.xlane.xlu0 %548
      %v550 = vsel %vm540, %v527, 0.0
      %551 = vadd.xlane.f32.xlu0 %v550
      %v552 = vpop.xlane.xlu0 %551
      %v553 = vsel %vm540, %v528, 0.0
      %554 = vadd.xlane.f32.xlu0 %v553
      %v555 = vpop.xlane.xlu0 %554
      %v556 = vsel %vm540, %v529, 0.0
      %557 = vadd.xlane.f32.xlu0 %v556
      %v558 = vpop.xlane.xlu0 %557
      %v559 = vsel %vm540, %v530, 0.0
      %560 = vadd.xlane.f32.xlu0 %v559
      %v561 = vpop.xlane.xlu0 %560
      %v562 = vsel %vm540, %v531, 0.0
      %563 = vadd.xlane.f32.xlu0 %v562
      %v564 = vpop.xlane.xlu0 %563
      %v565 = vsel %vm540, %v532, 0.0
      %566 = vadd.xlane.f32.xlu0 %v565
      %v567 = vpop.xlane.xlu0 %566
      %v568 = vsel %vm540, %v533, 0.0
      %569 = vadd.xlane.f32.xlu0 %v568
      %v570 = vpop.xlane.xlu0 %569
      %v571 = vsel %vm540, %v534, 0.0
      %572 = vadd.xlane.f32.xlu0 %v571
      %v573 = vpop.xlane.xlu0 %572
      %v574 = vsel %vm540, %v535, 0.0
      %575 = vadd.xlane.f32.xlu0 %v574
      %v576 = vpop.xlane.xlu0 %575
      %v577 = vsel %vm540, %v536, 0.0
      %578 = vadd.xlane.f32.xlu0 %v577
      %v579 = vpop.xlane.xlu0 %578
      %v580 = vsel %vm540, %v537, 0.0
      %581 = vadd.xlane.f32.xlu0 %v580
      %v582 = vpop.xlane.xlu0 %581
      %v583 = vsel %vm540, %v538, 0.0
      %584 = vadd.xlane.f32.xlu0 %v583
      %v585 = vpop.xlane.xlu0 %584
      %v586 = vsel %vm540, %v539, 0.0
      %587 = vadd.xlane.f32.xlu0 %v586
      %v588 = vpop.xlane.xlu0 %587
      %vm589 = vcmask 7168
      %590 = vst.msk [vmem:[%s240] sm:$0xff] %vm589, %v543
      %591 = vst.msk [vmem:[%s240 + $0x8] sm:$0xff] %vm589, %v546
      %592 = vst.msk [vmem:[%s240 + $0x10] sm:$0xff] %vm589, %v549
      %593 = vst.msk [vmem:[%s240 + $0x18] sm:$0xff] %vm589, %v552
      %594 = vst.msk [vmem:[%s240 + $0x20] sm:$0xff] %vm589, %v555
      %595 = vst.msk [vmem:[%s240 + $0x28] sm:$0xff] %vm589, %v558
      %596 = vst.msk [vmem:[%s240 + $0x30] sm:$0xff] %vm589, %v561
      %597 = vst.msk [vmem:[%s240 + $0x38] sm:$0xff] %vm589, %v564
      %598 = vst.msk [vmem:[%s240 + $0x40] sm:$0xff] %vm589, %v567
      %599 = vst.msk [vmem:[%s240 + $0x48] sm:$0xff] %vm589, %v570
      %600 = vst.msk [vmem:[%s240 + $0x50] sm:$0xff] %vm589, %v573
      %601 = vst.msk [vmem:[%s240 + $0x58] sm:$0xff] %vm589, %v576
      %602 = vst.msk [vmem:[%s240 + $0x60] sm:$0xff] %vm589, %v579
      %603 = vst.msk [vmem:[%s240 + $0x68] sm:$0xff] %vm589, %v582
      %604 = vst.msk [vmem:[%s240 + $0x70] sm:$0xff] %vm589, %v585
      %605 = vst.msk [vmem:[%s240 + $0x78] sm:$0xff] %vm589, %v588
      %s606 = smul.u32 16, %s17
      %p607 = scmp.lt.s32.totalorder %s606, 31
      %s608 = scalar_select %p607, %s606, 31
      %s609 = smul.addr %s608, 4
      %s610 = scalar_lea.vmem %s4, %s609
      %s611 = smul.u32 16, %s17
      %p612 = scmp.lt.s32.totalorder %s611, 31
      %s613 = scalar_select %p612, %s611, 31
      %s614 = smul.addr %s613, 8
      %s615 = scalar_lea.vmem %s5, %s614
      // Predicated region
      $region37: #{tpu_custom_call.1} parent=35 // pred_check
        %p616 = pneg %p124
      $region38: #{tpu_custom_call.1} parent=35 // pred_check_branch
        %618 = sbr.rel (%p616) target = $region40
      $region39: #{tpu_custom_call.1} parent=35 // pred_region
        %s619 = smul.u32 16, %s17
      $region40: #{tpu_custom_call.1} parent=35 // pred_fallthru
        _
      // Predicated region
      $region41: #{tpu_custom_call.1} parent=35 // pred_check
        %p620 = pneg %p150
      $region42: #{tpu_custom_call.1} parent=35 // pred_check_branch
        %622 = sbr.rel (%p620) target = $region44
      $region43: #{tpu_custom_call.1} parent=35 // pred_region
        %s623 = smul.u32 16, %s17
      $region44: #{tpu_custom_call.1} parent=35 // pred_fallthru
        _
    $region36: #{tpu_custom_call.1} parent=5 // pred_fallthru
      _
    %p624 = scmp.le.s32.totalorder 2, %s12
    // Predicated region
    $region45: #{tpu_custom_call.1} parent=5 // pred_check
      %p625 = pneg %p624
    $region46: #{tpu_custom_call.1} parent=5 // pred_check_branch
      %627 = sbr.rel (%p625) target = $region48
    $region47: #{tpu_custom_call.1} parent=5 // pred_region
      %s628 = ssub.s32 %s12, 2
      // Predicated region
      $region49: #{tpu_custom_call.1} parent=47 // pred_check
        %p629 = pneg %p130
      $region50: #{tpu_custom_call.1} parent=47 // pred_check_branch
        %631 = sbr.rel (%p629) target = $region52
      $region51: #{tpu_custom_call.1} parent=47 // pred_region
        %s632 = smul.u32 16, %s18
        %p633 = scmp.lt.s32.totalorder %s632, 31
        %s634 = scalar_select %p633, %s632, 31
        %s635 = smul.addr %s634, 4
        %s636 = scalar_lea.vmem %s4, %s635
      $region52: #{tpu_custom_call.1} parent=47 // pred_fallthru
        _
      // Predicated region
      $region53: #{tpu_custom_call.1} parent=47 // pred_check
        %p637 = pneg %p156
      $region54: #{tpu_custom_call.1} parent=47 // pred_check_branch
        %639 = sbr.rel (%p637) target = $region56
      $region55: #{tpu_custom_call.1} parent=47 // pred_region
        %s640 = smul.u32 16, %s18
        %p641 = scmp.lt.s32.totalorder %s640, 31
        %s642 = scalar_select %p641, %s640, 31
        %s643 = smul.addr %s642, 8
        %s644 = scalar_lea.vmem %s5, %s643
      $region56: #{tpu_custom_call.1} parent=47 // pred_fallthru
        _
    $region48: #{tpu_custom_call.1} parent=5 // pred_fallthru
      _
  $region6: #{tpu_custom_call.1} parent=0 // loop_footer
    %s16 = sadd.s32 1, %s12
  $region7: #{tpu_custom_call.1} parent=0 // loop_footer_branch
    %11 = sbr.rel target = $region3
  $region8: #{tpu_custom_call.1} parent=0 // loop_exit
    _

</llo_original>
